<compile_context>
chip_gen: v7x
topology: tpu7x:2x2x1
jax: 0.10.0
libtpu: 0.0.40
codegen_flags: <defaults>
</compile_context>

<pallas_src>
import functools
from typing import NamedTuple, Tuple

import jax
import jax.numpy as jnp
from jax.experimental import pallas as pl
from jax.experimental.pallas import tpu as pltpu


_LANE = 128
_SUBLANE = 8


def _round_up(x, m):
    return (x + m - 1) // m * m


# ---------------------------------------------------------------------------
# One-time parameter preparation (hoisted out of the per-call forward path).
# ---------------------------------------------------------------------------
class PreparedParams(NamedTuple):
    flat: Tuple        # (w0, b0, w1, b1, ..., w_{L-1}, b_{L-1}) ready for pallas_call
    in_dim: int
    out_dim: int       # real (unpadded) output width
    out_pad: int       # lane-dense padded output width
    num_layers: int
    layer_dims: Tuple  # padded (K, N) per layer, for the cost estimate
    hidden_dtype: object


def prepare_net_params(weights, biases, *, hidden_dtype=jnp.bfloat16):
    """Pad + cast parameters ONCE.

    weights: list of (in_i, out_i) f32 (already transposed vs. PyTorch's (out, in))
    biases:  list of (out_i,) f32

    Hidden / output widths are zero-padded up to multiples of 128 so every MXU
    operand and the output slab are lane-dense (padded activations stay exactly 0
    through bias-add + ReLU, so results are unchanged).  The input width is NOT
    padded, so x never needs a per-call pad.  Hidden weights are cast to bf16
    (MXU-native, half the DMA bytes); the final layer stays f32 for precision.
    """
    num_layers = len(weights)
    in_dim = int(weights[0].shape[0])
    out_dim = int(weights[-1].shape[1])

    flat = []
    layer_dims = []
    prev_out_pad = in_dim
    for i, (w, b) in enumerate(zip(weights, biases)):
        k, n = int(w.shape[0]), int(w.shape[1])
        k_pad = prev_out_pad                 # matches the (padded) previous activation
        n_pad = _round_up(n, _LANE)          # lane-dense columns
        wp = jnp.zeros((k_pad, n_pad), jnp.float32).at[:k, :n].set(w.astype(jnp.float32))
        bp = jnp.zeros((1, n_pad), jnp.float32).at[0, :n].set(b.astype(jnp.float32))
        last = (i == num_layers - 1)
        if not last:
            wp = wp.astype(hidden_dtype)     # bf16 MXU operands for hidden layers
        flat += [wp, bp]
        layer_dims.append((k_pad, n_pad))
        prev_out_pad = n_pad

    return PreparedParams(tuple(flat), in_dim, out_dim, prev_out_pad,
                          num_layers, tuple(layer_dims), hidden_dtype)


# ---------------------------------------------------------------------------
# Fused MLP kernel.
# ---------------------------------------------------------------------------
def _make_mlp_kernel(num_layers: int, last_activation, hidden_dtype):
    def kernel(*refs):
        # refs = [x_ref, w0, b0, ..., w_{L-1}, b_{L-1}, o_ref]
        x_ref = refs[0]
        o_ref = refs[-1]
        h = x_ref[...]                                   # f32 straight from HBM
        for i in range(num_layers):
            w = refs[1 + 2 * i][...]                     # (K_i, N_i)
            b = refs[2 + 2 * i][...]                     # (1, N_i) f32
            last = (i == num_layers - 1)
            # Hidden layers: bf16 MXU operands, f32 accumulation.
            # Final layer: f32 operands (precision for the safety constraint).
            lhs = h if last else h.astype(hidden_dtype)  # in-kernel cast (VPU, hidden under DMA/MXU)
            acc = jnp.dot(lhs, w, preferred_element_type=jnp.float32) + b
            if not last:
                h = jnp.maximum(acc, 0.0)                # F.relu, f32
            else:
                if last_activation == "tanh":
                    acc = jnp.tanh(acc)
                elif last_activation == "sigmoid":
                    acc = jax.nn.sigmoid(acc)
                # None -> identity (matches the module's else branch)
                h = acc
        o_ref[...] = h.astype(o_ref.dtype)

    return kernel


def _choose_batch_tile(B, max_batch_tile, num_parallel_cores):
    """Whole batch in one step when it fits and only one core is targeted;
    otherwise >= num_parallel_cores steps (v7x megacore) with >=8-row tiles,
    preferring a tile that divides B so no wrapper-side jnp.pad of x is needed."""
    if num_parallel_cores <= 1 and B <= max_batch_tile:
        return B
    target = min(max_batch_tile,
                 max(_SUBLANE, _round_up(pl.cdiv(B, max(num_parallel_cores, 1)), _SUBLANE)))
    t = (target // _SUBLANE) * _SUBLANE
    while t >= _SUBLANE:
        if B % t == 0:
            return t
        t -= _SUBLANE
    return min(target, B)   # fall back; the wrapper will pad the ragged tail


def mlp_forward(x, params: PreparedParams, *, last_activation=None,
                max_batch_tile=512, num_parallel_cores=1,
                single_buffer_params=False, vmem_limit_bytes=None):
    """Fused MLP forward.  `params` must come from `prepare_net_params` (no per-call
    padding / casting / reshaping happens here)."""
    B, in_dim = x.shape
    assert in_dim == params.in_dim, "x feature dim does not match prepared params"

    batch_tile = _choose_batch_tile(B, max_batch_tile, num_parallel_cores)
    B_pad = _round_up(B, batch_tile)
    # Only taken when no multiple-of-8 tile divides B on the large-B path.
    x_p = x if B_pad == B else jnp.pad(x, ((0, B_pad - B), (0, 0)))

    kernel = _make_mlp_kernel(params.num_layers, last_activation, params.hidden_dtype)

    # Constant-index weight/bias blocks; optionally single-buffered (wide hiddens on v7x).
    param_pipeline = pl.Buffered(1) if single_buffer_params else None
    in_specs = [pl.BlockSpec((batch_tile, in_dim), lambda i: (i, 0))]
    for w, b in zip(params.flat[0::2], params.flat[1::2]):
        in_specs.append(pl.BlockSpec(w.shape, lambda i: (0, 0), pipeline_mode=param_pipeline))
        in_specs.append(pl.BlockSpec(b.shape, lambda i: (0, 0), pipeline_mode=param_pipeline))
    out_specs = pl.BlockSpec((batch_tile, params.out_pad), lambda i: (i, 0))

    # Advisory cost estimate for XLA's scheduler.
    flops = 2 * B_pad * sum(k * n for k, n in params.layer_dims)
    transcendentals = B_pad * params.out_pad if last_activation in ("tanh", "sigmoid") else 0
    bytes_accessed = (int(x_p.size) * x_p.dtype.itemsize
                      + sum(int(a.size) * a.dtype.itemsize for a in params.flat)
                      + B_pad * params.out_pad * 4)

    out = pl.pallas_call(
        kernel,
        out_shape=jax.ShapeDtypeStruct((B_pad, params.out_pad), jnp.float32),
        grid=(B_pad // batch_tile,),
        in_specs=in_specs,
        out_specs=out_specs,
        compiler_params=pltpu.CompilerParams(
            dimension_semantics=("parallel",),
            vmem_limit_bytes=vmem_limit_bytes,
        ),
        cost_estimate=pl.CostEstimate(
            flops=int(flops),
            transcendentals=int(transcendentals),
            bytes_accessed=int(bytes_accessed),
        ),
    )(x_p, *params.flat)

    return out[:B, :params.out_dim]


# ---------------------------------------------------------------------------
# Init + pure-JAX reference (for the self-test).
# ---------------------------------------------------------------------------
def init_net_params(key, in_dim, out_dim, layer_dims, init_bound):
    """Deterministic init mirroring Net.__init__/_init_weights.

    Hidden-layer weights: self._initializer -> here: normal(0, 0.1) (synthetic choice).
    Last-layer weights:   uniform_(-bound, bound).
    Biases: PyTorch Linear default uniform(-1/sqrt(fan_in), 1/sqrt(fan_in)).
    Weights are returned already transposed to (in, out).
    """
    dims = [in_dim] + list(layer_dims) + [out_dim]
    weights, biases = [], []
    for li, (fan_in, fan_out) in enumerate(zip(dims[:-1], dims[1:])):
        key, kw, kb = jax.random.split(key, 3)
        if li == len(dims) - 2:  # last layer
            w = jax.random.uniform(kw, (fan_in, fan_out), jnp.float32,
                                   minval=-init_bound, maxval=init_bound)
        else:
            w = 0.1 * jax.random.normal(kw, (fan_in, fan_out), jnp.float32)
        bb = 1.0 / jnp.sqrt(jnp.float32(fan_in))
        b = jax.random.uniform(kb, (fan_out,), jnp.float32, minval=-bb, maxval=bb)
        weights.append(w)
        biases.append(b)
    return weights, biases


def mlp_reference(x, weights, biases, last_activation=None):
    """Pure-JAX f32 reference of the module's forward pass."""
    out = x
    n = len(weights)
    for i, (w, b) in enumerate(zip(weights, biases)):
        out = out @ w + b
        if i < n - 1:
            out = jnp.maximum(out, 0.0)
        elif last_activation == "tanh":
            out = jnp.tanh(out)
        elif last_activation == "sigmoid":
            out = jax.nn.sigmoid(out)
    return out


if __name__ == "__main__":
    # Small shapes consistent with the module: in_dim=32, hidden=[64, 64], out_dim=16, batch=16.
    B, in_dim, out_dim = 16, 32, 16
    layer_dims = [64, 64]
    init_bound = 3e-3
    last_activation = None  # safety-layer constraint nets use no final activation

    key = jax.random.PRNGKey(0)
    key, kx = jax.random.split(key)
    x = jax.random.normal(kx, (B, in_dim), jnp.float32)

    weights, biases = init_net_params(key, in_dim, out_dim, layer_dims, init_bound)

    # One-time parameter preparation (pad to lane-dense slabs, bf16 hidden weights).
    prepared = prepare_net_params(weights, biases)

    # The jitted forward contains ONLY the fused pallas_call (+ final slice):
    # no per-call param pads/casts, no wrapper cast of x.
    fwd = jax.jit(functools.partial(mlp_forward, params=prepared,
                                    last_activation=last_activation))

    out = jax.block_until_ready(fwd(x))

    ref = mlp_reference(x, weights, biases, last_activation=last_activation)
    assert out.shape == (B, out_dim)
    # bf16 hidden-layer MXU operands vs f32 reference: allow bf16-level tolerance.
    assert jnp.allclose(out, ref, atol=1e-2, rtol=1e-2), "Pallas output mismatch vs reference"

    print("KERNEL_OK")
</pallas_src>

<mosaic_0001>
module attributes {stable_mosaic.version = 11 : i64} {
  func.func @kernel(%arg0: i32, %arg1: memref<16x32xf32, #tpu.memory_space<vmem>>, %arg2: memref<32x128xbf16, #tpu.memory_space<vmem>>, %arg3: memref<1x128xf32, #tpu.memory_space<vmem>>, %arg4: memref<128x128xbf16, #tpu.memory_space<vmem>>, %arg5: memref<1x128xf32, #tpu.memory_space<vmem>>, %arg6: memref<128x128xf32, #tpu.memory_space<vmem>>, %arg7: memref<1x128xf32, #tpu.memory_space<vmem>>, %arg8: memref<16x128xf32, #tpu.memory_space<vmem>>) attributes {dimension_semantics = [#tpu.dimension_semantics<parallel>], iteration_bounds = array<i64: 1>, scalar_prefetch = 0 : i64, scratch_operands = 0 : i64, tpu.core_type = #tpu.core_type<tc>, window_params = [{transform_indices = @transform_0, window_bounds = array<i64: 16, 32>}, {pipeline_mode = #tpu.pipeline_mode<synchronous>, transform_indices = @transform_1, window_bounds = array<i64: 32, 128>}, {pipeline_mode = #tpu.pipeline_mode<synchronous>, transform_indices = @transform_2, window_bounds = array<i64: 1, 128>}, {pipeline_mode = #tpu.pipeline_mode<synchronous>, transform_indices = @transform_3, window_bounds = array<i64: 128, 128>}, {pipeline_mode = #tpu.pipeline_mode<synchronous>, transform_indices = @transform_4, window_bounds = array<i64: 1, 128>}, {pipeline_mode = #tpu.pipeline_mode<synchronous>, transform_indices = @transform_5, window_bounds = array<i64: 128, 128>}, {pipeline_mode = #tpu.pipeline_mode<synchronous>, transform_indices = @transform_6, window_bounds = array<i64: 1, 128>}, {transform_indices = @transform_7, window_bounds = array<i64: 16, 128>}]} {
    %c0 = arith.constant 0 : index
    %c0_0 = arith.constant 0 : index
    %0 = vector.load %arg1[%c0, %c0_0] : memref<16x32xf32, #tpu.memory_space<vmem>>, vector<16x32xf32>
    %c0_1 = arith.constant 0 : index
    %c0_2 = arith.constant 0 : index
    %1 = vector.load %arg2[%c0_1, %c0_2] : memref<32x128xbf16, #tpu.memory_space<vmem>>, vector<32x128xbf16>
    %c0_3 = arith.constant 0 : index
    %c0_4 = arith.constant 0 : index
    %2 = vector.load %arg3[%c0_3, %c0_4] : memref<1x128xf32, #tpu.memory_space<vmem>>, vector<1x128xf32>
    %3 = arith.truncf %0 : vector<16x32xf32> to vector<16x32xbf16>
    %cst = arith.constant dense<0.000000e+00> : vector<16x128xf32>
    %4 = tpu.matmul %3, %1, %cst {dimension_numbers = #tpu.dot_dimension_numbers<[1], [0], [0], [1], [0, 0, 1, 1], [], []>} : vector<16x32xbf16>, vector<32x128xbf16>, vector<16x128xf32> -> vector<16x128xf32>
    %5 = vector.broadcast %2 : vector<1x128xf32> to vector<16x128xf32>
    %6 = arith.addf %4, %5 : vector<16x128xf32>
    %cst_5 = arith.constant 0.000000e+00 : f32
    %7 = vector.broadcast %cst_5 : f32 to vector<16x128xf32>
    %8 = arith.maximumf %6, %7 : vector<16x128xf32>
    %c0_6 = arith.constant 0 : index
    %c0_7 = arith.constant 0 : index
    %9 = vector.load %arg4[%c0_6, %c0_7] : memref<128x128xbf16, #tpu.memory_space<vmem>>, vector<128x128xbf16>
    %c0_8 = arith.constant 0 : index
    %c0_9 = arith.constant 0 : index
    %10 = vector.load %arg5[%c0_8, %c0_9] : memref<1x128xf32, #tpu.memory_space<vmem>>, vector<1x128xf32>
    %11 = arith.truncf %8 : vector<16x128xf32> to vector<16x128xbf16>
    %cst_10 = arith.constant dense<0.000000e+00> : vector<16x128xf32>
    %12 = tpu.matmul %11, %9, %cst_10 {dimension_numbers = #tpu.dot_dimension_numbers<[1], [0], [0], [1], [0, 0, 1, 1], [], []>} : vector<16x128xbf16>, vector<128x128xbf16>, vector<16x128xf32> -> vector<16x128xf32>
    %13 = vector.broadcast %10 : vector<1x128xf32> to vector<16x128xf32>
    %14 = arith.addf %12, %13 : vector<16x128xf32>
    %cst_11 = arith.constant 0.000000e+00 : f32
    %15 = vector.broadcast %cst_11 : f32 to vector<16x128xf32>
    %16 = arith.maximumf %14, %15 : vector<16x128xf32>
    %c0_12 = arith.constant 0 : index
    %c0_13 = arith.constant 0 : index
    %17 = vector.load %arg6[%c0_12, %c0_13] : memref<128x128xf32, #tpu.memory_space<vmem>>, vector<128x128xf32>
    %c0_14 = arith.constant 0 : index
    %c0_15 = arith.constant 0 : index
    %18 = vector.load %arg7[%c0_14, %c0_15] : memref<1x128xf32, #tpu.memory_space<vmem>>, vector<1x128xf32>
    %cst_16 = arith.constant dense<0.000000e+00> : vector<16x128xf32>
    %19 = tpu.matmul %16, %17, %cst_16 {dimension_numbers = #tpu.dot_dimension_numbers<[1], [0], [0], [1], [0, 0, 1, 1], [], []>} : vector<16x128xf32>, vector<128x128xf32>, vector<16x128xf32> -> vector<16x128xf32>
    %20 = vector.broadcast %18 : vector<1x128xf32> to vector<16x128xf32>
    %21 = arith.addf %19, %20 : vector<16x128xf32>
    %c0_17 = arith.constant 0 : index
    %c0_18 = arith.constant 0 : index
    %22 = vector.load %arg8[%c0_17, %c0_18] : memref<16x128xf32, #tpu.memory_space<vmem>>, vector<16x128xf32>
    tpu.vector_store %arg8[%c0_17, %c0_18], %21 {strides = array<i32>} : memref<16x128xf32, #tpu.memory_space<vmem>>, vector<16x128xf32>,
    return
  }
  func.func @transform_0(%arg0: i32) -> (i32, i32) {
    %c0_i32 = arith.constant 0 : i32
    %c0_i32_0 = arith.constant 0 : i32
    return %arg0, %c0_i32 : i32, i32
  }
  func.func @transform_1(%arg0: i32) -> (i32, i32) {
    %c0_i32 = arith.constant 0 : i32
    %c0_i32_0 = arith.constant 0 : i32
    %c0_i32_1 = arith.constant 0 : i32
    return %c0_i32, %c0_i32_0 : i32, i32
  }
  func.func @transform_2(%arg0: i32) -> (i32, i32) {
    %c0_i32 = arith.constant 0 : i32
    %c0_i32_0 = arith.constant 0 : i32
    %c0_i32_1 = arith.constant 0 : i32
    return %c0_i32, %c0_i32_0 : i32, i32
  }
  func.func @transform_3(%arg0: i32) -> (i32, i32) {
    %c0_i32 = arith.constant 0 : i32
    %c0_i32_0 = arith.constant 0 : i32
    %c0_i32_1 = arith.constant 0 : i32
    return %c0_i32, %c0_i32_0 : i32, i32
  }
  func.func @transform_4(%arg0: i32) -> (i32, i32) {
    %c0_i32 = arith.constant 0 : i32
    %c0_i32_0 = arith.constant 0 : i32
    %c0_i32_1 = arith.constant 0 : i32
    return %c0_i32, %c0_i32_0 : i32, i32
  }
  func.func @transform_5(%arg0: i32) -> (i32, i32) {
    %c0_i32 = arith.constant 0 : i32
    %c0_i32_0 = arith.constant 0 : i32
    %c0_i32_1 = arith.constant 0 : i32
    return %c0_i32, %c0_i32_0 : i32, i32
  }
  func.func @transform_6(%arg0: i32) -> (i32, i32) {
    %c0_i32 = arith.constant 0 : i32
    %c0_i32_0 = arith.constant 0 : i32
    %c0_i32_1 = arith.constant 0 : i32
    return %c0_i32, %c0_i32_0 : i32, i32
  }
  func.func @transform_7(%arg0: i32) -> (i32, i32) {
    %c0_i32 = arith.constant 0 : i32
    %c0_i32_0 = arith.constant 0 : i32
    return %arg0, %c0_i32 : i32, i32
  }
}

</mosaic_0001>

<llo_original>
// kernel: mlp_forward.1
$region0: #{mlp_forward.1}
  #allocation0 [shape = 'u32[]', space=smem, size = 0x4, offset = 0x4, fixed_abs, tag = 'smem constant byte address 0x4 - core index']
  #allocation1 [shape = 'u32[144,128]{1,0:T(1,128)}', space=vmem, size = 0x12000, scoped, tag = 'internal scratch']
  %s0 = inlined_call_operand.hbm [shape: f32[16,32], index: 0, kind: input, shape index: {}]
  %s1 = inlined_call_operand.vmem [shape: bf16[32,128], index: 1, kind: input, shape index: {}]
  %s2 = inlined_call_operand.vmem [shape: f32[1,128], index: 2, kind: input, shape index: {}]
  %s3 = inlined_call_operand.hbm [shape: bf16[128,128], index: 3, kind: input, shape index: {}]
  %s4 = inlined_call_operand.vmem [shape: f32[1,128], index: 4, kind: input, shape index: {}]
  %s5 = inlined_call_operand.hbm [shape: f32[128,128], index: 5, kind: input, shape index: {}]
  %s6 = inlined_call_operand.vmem [shape: f32[1,128], index: 6, kind: input, shape index: {}]
  %s7 = inlined_call_operand.hbm [shape: f32[16,128], index: 7, kind: output, shape index: {}]
  %s8 = sld [smem:[#allocation0]]
  $region50: #{mlp_forward.1} parent=0
    _
  %s10 = ssub.s32 1, %s8
  %s11 = scalar_select 0, %s10, %s8
  $region1: #{mlp_forward.1} parent=0
    #allocation2 [shape = 'u8[8192]{0}', space=vmem, size = 0x2000, scoped, tag = 'input window, operand 0, single buffered']
    #allocation3 [shape = 's32[1]{0}', space=sflag, size = 0x4, scoped, tag = 'scoped memory for mlp_forward.1']
    #allocation4 [shape = 's32[1]{0}', space=sflag, size = 0x4, scoped, tag = 'scoped memory for mlp_forward.1']
    #allocation5 [shape = 'u8[32768]{0}', space=vmem, size = 0x8000, scoped, tag = 'input window, operand 3, single buffered']
    #allocation6 [shape = 's32[1]{0}', space=sflag, size = 0x4, scoped, tag = 'scoped memory for mlp_forward.1']
    #allocation7 [shape = 'u8[65536]{0}', space=vmem, size = 0x10000, scoped, tag = 'input window, operand 5, single buffered']
    #allocation8 [shape = 'u8[8192]{0}', space=vmem, size = 0x2000, scoped, tag = 'output window, operand 0, single buffered']
    %12 = vsyncpa [#allocation3], 0
    %13 = vsyncpa [#allocation6], 0
    %14 = vsyncpa [#allocation4], 0
    // Predicated region
    $region2: #{mlp_forward.1} parent=1 // pred_check
      _
    $region3: #{mlp_forward.1} parent=1 // pred_check_branch
      %16 = sbr.rel (0) target = $region5
    $region4: #{mlp_forward.1} parent=1 // pred_region
      %s18 = ssub.s32 256, 256
      %19 = vsyncadd [#allocation3], %s18
      %s20 = sshll.u32 [#allocation2], 4
      %s21 = int_to_ptr.vmem [resolvable:$true] %s20
      %26 = dma.hbm_to_vmem [thread:$0]  %s0, 256, %s21, [#allocation3], 128, 128, 8
    $region5: #{mlp_forward.1} parent=1 // pred_fallthru
      _
    // Predicated region
    $region6: #{mlp_forward.1} parent=1 // pred_check
      _
    $region7: #{mlp_forward.1} parent=1 // pred_check_branch
      %28 = sbr.rel (0) target = $region9
    $region8: #{mlp_forward.1} parent=1 // pred_region
      _
    $region9: #{mlp_forward.1} parent=1 // pred_fallthru
      _
    // Predicated region
    $region10: #{mlp_forward.1} parent=1 // pred_check
      _
    $region11: #{mlp_forward.1} parent=1 // pred_check_branch
      %30 = sbr.rel (0) target = $region13
    $region12: #{mlp_forward.1} parent=1 // pred_region
      _
    $region13: #{mlp_forward.1} parent=1 // pred_fallthru
      _
    // Predicated region
    $region14: #{mlp_forward.1} parent=1 // pred_check
      _
    $region15: #{mlp_forward.1} parent=1 // pred_check_branch
      %32 = sbr.rel (0) target = $region17
    $region16: #{mlp_forward.1} parent=1 // pred_region
      %s34 = ssub.s32 1024, 1024
      %35 = vsyncadd [#allocation6], %s34
      %s36 = sshll.u32 [#allocation5], 4
      %s37 = int_to_ptr.vmem [resolvable:$true] %s36
      %42 = dma.hbm_to_vmem [thread:$0]  %s3, 1024, %s37, [#allocation6], 64, 64, 4
    $region17: #{mlp_forward.1} parent=1 // pred_fallthru
      _
    // Predicated region
    $region18: #{mlp_forward.1} parent=1 // pred_check
      _
    $region19: #{mlp_forward.1} parent=1 // pred_check_branch
      %44 = sbr.rel (0) target = $region21
    $region20: #{mlp_forward.1} parent=1 // pred_region
      _
    $region21: #{mlp_forward.1} parent=1 // pred_fallthru
      _
    // Predicated region
    $region22: #{mlp_forward.1} parent=1 // pred_check
      _
    $region23: #{mlp_forward.1} parent=1 // pred_check_branch
      %46 = sbr.rel (0) target = $region25
    $region24: #{mlp_forward.1} parent=1 // pred_region
      %s48 = ssub.s32 2048, 2048
      %49 = vsyncadd [#allocation6], %s48
      %s50 = sshll.u32 [#allocation7], 4
      %s51 = int_to_ptr.vmem [resolvable:$true] %s50
      %56 = dma.hbm_to_vmem [thread:$0]  %s5, 2048, %s51, [#allocation6], 128, 128, 8
    $region25: #{mlp_forward.1} parent=1 // pred_fallthru
      _
    // Predicated region
    $region26: #{mlp_forward.1} parent=1 // pred_check
      _
    $region27: #{mlp_forward.1} parent=1 // pred_check_branch
      %58 = sbr.rel (0) target = $region29
    $region28: #{mlp_forward.1} parent=1 // pred_region
      _
    $region29: #{mlp_forward.1} parent=1 // pred_fallthru
      _
    // Predicated region
    $region30: #{mlp_forward.1} parent=1 // pred_check
      _
    $region31: #{mlp_forward.1} parent=1 // pred_check_branch
      %60 = sbr.rel (0) target = $region33
    $region32: #{mlp_forward.1} parent=1 // pred_region
      %61 = dma.done [#allocation3], 256
    $region33: #{mlp_forward.1} parent=1 // pred_fallthru
      _
    // Predicated region
    $region34: #{mlp_forward.1} parent=1 // pred_check
      _
    $region35: #{mlp_forward.1} parent=1 // pred_check_branch
      %63 = sbr.rel (0) target = $region37
    $region36: #{mlp_forward.1} parent=1 // pred_region
      %64 = dma.done [#allocation6], 1024
    $region37: #{mlp_forward.1} parent=1 // pred_fallthru
      _
    // Predicated region
    $region38: #{mlp_forward.1} parent=1 // pred_check
      _
    $region39: #{mlp_forward.1} parent=1 // pred_check_branch
      %66 = sbr.rel (0) target = $region41
    $region40: #{mlp_forward.1} parent=1 // pred_region
      %67 = dma.done [#allocation6], 2048
    $region41: #{mlp_forward.1} parent=1 // pred_fallthru
      _
    %v69 = vld [vmem:[#allocation2] sm:$0xff]
    %v70 = vld [vmem:[#allocation2 + $0x8] sm:$0xff]
    %v71 = vld [vmem:[%s1] sm:$0xf]
    %v72 = vld [vmem:[%s1 + $0x4] sm:$0xf]
    %v73 = vld [vmem:[%s1 + $0x8] sm:$0xf]
    %v74 = vld [vmem:[%s1 + $0xc] sm:$0xf]
    %v75 = vld [vmem:[%s2] sm:$0x1]
    %v76 = vpack.c.bf16 %v70, %v69
    %v78 = vlaneseq
    %v79 = vshrl.u32 %v78, 7
    %v80 = vsub.s32 0, %v79
    %v81 = vrot.slane %v75, %v80
    %v87 = vunpack.c.l.b16 %v71
    %v88 = vunpack.c.l.b16 %v72
    %v89 = vunpack.c.l.b16 %v73
    %v90 = vunpack.c.l.b16 %v74
    %v91 = vpack.c.b16 %v88, %v87
    %v92 = vpack.c.b16 %v90, %v89
    %vm95 = vcmask 261120
    %v97 = vsel %vm95, %v76, 0
    %99 = vmatprep.subr.bf16.mxu0 0
    %100 = vmatpush1.bf16.msra.mxu0 %v91
    %101 = vmatprep.subr.bf16.mxu0 0
    %102 = vmatpush1.bf16.msra.mxu0 %v92
    %103 = vmatprep.subr.bf16.mxu0 0
    %104 = vmatpush1.bf16.msra.mxu0 0
    %105 = vmatprep.subr.bf16.mxu0 0
    %106 = vmatpush1.bf16.msra.mxu0 0
    %107 = vmatprep.subr.bf16.mxu0 0
    %108 = vmatpush1.bf16.msra.mxu0 0
    %109 = vmatprep.subr.bf16.mxu0 0
    %110 = vmatpush1.bf16.msra.mxu0 0
    %111 = vmatprep.subr.bf16.mxu0 0
    %112 = vmatpush1.bf16.msra.mxu0 0
    %113 = vmatprep.subr.bf16.mxu0 0
    %114 = vmatpush1.bf16.msra.mxu0 0
    %115 = vmatprep.subr.bf16.mxu0 0
    %116 = vmatpush1.bf16.msra.mxu0 0
    %117 = vmatprep.subr.bf16.mxu0 0
    %118 = vmatpush1.bf16.msra.mxu0 0
    %119 = vmatprep.subr.bf16.mxu0 0
    %120 = vmatpush1.bf16.msra.mxu0 0
    %121 = vmatprep.subr.bf16.mxu0 0
    %122 = vmatpush1.bf16.msra.mxu0 0
    %123 = vmatprep.subr.bf16.mxu0 0
    %124 = vmatpush1.bf16.msra.mxu0 0
    %125 = vmatprep.subr.bf16.mxu0 0
    %126 = vmatpush1.bf16.msra.mxu0 0
    %127 = vmatprep.subr.bf16.mxu0 0
    %128 = vmatpush1.bf16.msra.mxu0 0
    %129 = vmatprep.subr.bf16.mxu0 0
    %130 = vmatpush1.bf16.msra.mxu0 0
    %131 = vmatprep.mubr.bf16.mxu0 0
    %132 = vmatmul.mubr.bf16.gmra.mrb[0].mxu0 %v97
    %v133 = vpop.f32.mrb[0].mxu0
    %v134 = vadd.f32 %v81, %v133
    %v135 = vpop.f32.mrb[0].mxu0
    %v136 = vpop.f32.mrb[0].mxu0
    %v137 = vadd.f32 %v81, %v136
    %v138 = vpop.f32.mrb[0].mxu0
    %139 = vdwg.mxu0
    %v140 = vmax.f32 %v134, 0.0
    %v141 = vmax.f32 %v137, 0.0
    %v142 = vld [vmem:[#allocation5] sm:$0xf]
    %v143 = vld [vmem:[#allocation5 + $0x4] sm:$0xf]
    %v144 = vld [vmem:[#allocation5 + $0x8] sm:$0xf]
    %v145 = vld [vmem:[#allocation5 + $0xc] sm:$0xf]
    %v146 = vld [vmem:[#allocation5 + $0x10] sm:$0xf]
    %v147 = vld [vmem:[#allocation5 + $0x14] sm:$0xf]
    %v148 = vld [vmem:[#allocation5 + $0x18] sm:$0xf]
    %v149 = vld [vmem:[#allocation5 + $0x1c] sm:$0xf]
    %v150 = vld [vmem:[#allocation5 + $0x20] sm:$0xf]
    %v151 = vld [vmem:[#allocation5 + $0x24] sm:$0xf]
    %v152 = vld [vmem:[#allocation5 + $0x28] sm:$0xf]
    %v153 = vld [vmem:[#allocation5 + $0x2c] sm:$0xf]
    %v154 = vld [vmem:[#allocation5 + $0x30] sm:$0xf]
    %v155 = vld [vmem:[#allocation5 + $0x34] sm:$0xf]
    %v156 = vld [vmem:[#allocation5 + $0x38] sm:$0xf]
    %v157 = vld [vmem:[#allocation5 + $0x3c] sm:$0xf]
    %v158 = vld [vmem:[%s4] sm:$0x1]
    %v159 = vpack.c.bf16 %v141, %v140
    %v161 = vlaneseq
    %v162 = vshrl.u32 %v161, 7
    %v163 = vsub.s32 0, %v162
    %v164 = vrot.slane %v158, %v163
    %v182 = vunpack.c.l.b16 %v142
    %v183 = vunpack.c.l.b16 %v143
    %v184 = vunpack.c.l.b16 %v144
    %v185 = vunpack.c.l.b16 %v145
    %v186 = vunpack.c.l.b16 %v146
    %v187 = vunpack.c.l.b16 %v147
    %v188 = vunpack.c.l.b16 %v148
    %v189 = vunpack.c.l.b16 %v149
    %v190 = vunpack.c.l.b16 %v150
    %v191 = vunpack.c.l.b16 %v151
    %v192 = vunpack.c.l.b16 %v152
    %v193 = vunpack.c.l.b16 %v153
    %v194 = vunpack.c.l.b16 %v154
    %v195 = vunpack.c.l.b16 %v155
    %v196 = vunpack.c.l.b16 %v156
    %v197 = vunpack.c.l.b16 %v157
    %v198 = vpack.c.b16 %v183, %v182
    %v199 = vpack.c.b16 %v185, %v184
    %v200 = vpack.c.b16 %v187, %v186
    %v201 = vpack.c.b16 %v189, %v188
    %v202 = vpack.c.b16 %v191, %v190
    %v203 = vpack.c.b16 %v193, %v192
    %v204 = vpack.c.b16 %v195, %v194
    %v205 = vpack.c.b16 %v197, %v196
    %214 = vmatprep.subr.bf16.mxu0 0
    %215 = vmatpush1.bf16.msra.mxu0 %v198
    %216 = vmatprep.subr.bf16.mxu0 0
    %217 = vmatpush1.bf16.msra.mxu0 %v199
    %218 = vmatprep.subr.bf16.mxu0 0
    %219 = vmatpush1.bf16.msra.mxu0 %v200
    %220 = vmatprep.subr.bf16.mxu0 0
    %221 = vmatpush1.bf16.msra.mxu0 %v201
    %222 = vmatprep.subr.bf16.mxu0 0
    %223 = vmatpush1.bf16.msra.mxu0 %v202
    %224 = vmatprep.subr.bf16.mxu0 0
    %225 = vmatpush1.bf16.msra.mxu0 %v203
    %226 = vmatprep.subr.bf16.mxu0 0
    %227 = vmatpush1.bf16.msra.mxu0 %v204
    %228 = vmatprep.subr.bf16.mxu0 0
    %229 = vmatpush1.bf16.msra.mxu0 %v205
    %230 = vmatprep.subr.bf16.mxu0 0
    %231 = vmatpush1.bf16.msra.mxu0 0
    %232 = vmatprep.subr.bf16.mxu0 0
    %233 = vmatpush1.bf16.msra.mxu0 0
    %234 = vmatprep.subr.bf16.mxu0 0
    %235 = vmatpush1.bf16.msra.mxu0 0
    %236 = vmatprep.subr.bf16.mxu0 0
    %237 = vmatpush1.bf16.msra.mxu0 0
    %238 = vmatprep.subr.bf16.mxu0 0
    %239 = vmatpush1.bf16.msra.mxu0 0
    %240 = vmatprep.subr.bf16.mxu0 0
    %241 = vmatpush1.bf16.msra.mxu0 0
    %242 = vmatprep.subr.bf16.mxu0 0
    %243 = vmatpush1.bf16.msra.mxu0 0
    %244 = vmatprep.subr.bf16.mxu0 0
    %245 = vmatpush1.bf16.msra.mxu0 0
    %246 = vmatprep.mubr.bf16.mxu0 0
    %247 = vmatmul.mubr.bf16.gmra.mrb[0].mxu0 %v159
    %v248 = vpop.f32.mrb[0].mxu0
    %v249 = vadd.f32 %v164, %v248
    %v250 = vpop.f32.mrb[0].mxu0
    %v251 = vpop.f32.mrb[0].mxu0
    %v252 = vadd.f32 %v164, %v251
    %v253 = vpop.f32.mrb[0].mxu0
    %254 = vdwg.mxu0
    %v255 = vmax.f32 %v249, 0.0
    %v256 = vmax.f32 %v252, 0.0
    %v257 = vld [vmem:[#allocation7] sm:$0xff]
    %v258 = vld [vmem:[#allocation7 + $0x8] sm:$0xff]
    %v259 = vld [vmem:[#allocation7 + $0x10] sm:$0xff]
    %v260 = vld [vmem:[#allocation7 + $0x18] sm:$0xff]
    %v261 = vld [vmem:[#allocation7 + $0x20] sm:$0xff]
    %v262 = vld [vmem:[#allocation7 + $0x28] sm:$0xff]
    %v263 = vld [vmem:[#allocation7 + $0x30] sm:$0xff]
    %v264 = vld [vmem:[#allocation7 + $0x38] sm:$0xff]
    %v265 = vld [vmem:[#allocation7 + $0x40] sm:$0xff]
    %v266 = vld [vmem:[#allocation7 + $0x48] sm:$0xff]
    %v267 = vld [vmem:[#allocation7 + $0x50] sm:$0xff]
    %v268 = vld [vmem:[#allocation7 + $0x58] sm:$0xff]
    %v269 = vld [vmem:[#allocation7 + $0x60] sm:$0xff]
    %v270 = vld [vmem:[#allocation7 + $0x68] sm:$0xff]
    %v271 = vld [vmem:[#allocation7 + $0x70] sm:$0xff]
    %v272 = vld [vmem:[#allocation7 + $0x78] sm:$0xff]
    %v273 = vld [vmem:[%s6] sm:$0x1]
    %v275 = vlaneseq
    %v276 = vshrl.u32 %v275, 7
    %v277 = vsub.s32 0, %v276
    %v278 = vrot.slane %v273, %v277
    %280 = vmatprep.subr.mxu0 0.0
    %281 = vmatpush1.msra.mxu0 %v257
    %282 = vmatprep.subr.mxu0 0.0
    %283 = vmatpush1.msra.mxu0 %v258
    %284 = vmatprep.subr.mxu0 0.0
    %285 = vmatpush1.msra.mxu0 %v259
    %286 = vmatprep.subr.mxu0 0.0
    %287 = vmatpush1.msra.mxu0 %v260
    %288 = vmatprep.subr.mxu0 0.0
    %289 = vmatpush1.msra.mxu0 %v261
    %290 = vmatprep.subr.mxu0 0.0
    %291 = vmatpush1.msra.mxu0 %v262
    %292 = vmatprep.subr.mxu0 0.0
    %293 = vmatpush1.msra.mxu0 %v263
    %294 = vmatprep.subr.mxu0 0.0
    %295 = vmatpush1.msra.mxu0 %v264
    %296 = vmatprep.subr.mxu0 0.0
    %297 = vmatpush1.msra.mxu0 %v265
    %298 = vmatprep.subr.mxu0 0.0
    %299 = vmatpush1.msra.mxu0 %v266
    %300 = vmatprep.subr.mxu0 0.0
    %301 = vmatpush1.msra.mxu0 %v267
    %302 = vmatprep.subr.mxu0 0.0
    %303 = vmatpush1.msra.mxu0 %v268
    %304 = vmatprep.subr.mxu0 0.0
    %305 = vmatpush1.msra.mxu0 %v269
    %306 = vmatprep.subr.mxu0 0.0
    %307 = vmatpush1.msra.mxu0 %v270
    %308 = vmatprep.subr.mxu0 0.0
    %309 = vmatpush1.msra.mxu0 %v271
    %310 = vmatprep.subr.mxu0 0.0
    %311 = vmatpush1.msra.mxu0 %v272
    %312 = vmatprep.subr.mxu0 0.0
    %313 = vmatpush1.msra.mxu0 0.0
    %314 = vmatprep.subr.mxu0 0.0
    %315 = vmatpush1.msra.mxu0 0.0
    %316 = vmatprep.subr.mxu0 0.0
    %317 = vmatpush1.msra.mxu0 0.0
    %318 = vmatprep.subr.mxu0 0.0
    %319 = vmatpush1.msra.mxu0 0.0
    %320 = vmatprep.subr.mxu0 0.0
    %321 = vmatpush1.msra.mxu0 0.0
    %322 = vmatprep.subr.mxu0 0.0
    %323 = vmatpush1.msra.mxu0 0.0
    %324 = vmatprep.subr.mxu0 0.0
    %325 = vmatpush1.msra.mxu0 0.0
    %326 = vmatprep.subr.mxu0 0.0
    %327 = vmatpush1.msra.mxu0 0.0
    %328 = vmatprep.subr.mxu0 0.0
    %329 = vmatpush1.msra.mxu0 0.0
    %330 = vmatprep.subr.mxu0 0.0
    %331 = vmatpush1.msra.mxu0 0.0
    %332 = vmatprep.subr.mxu0 0.0
    %333 = vmatpush1.msra.mxu0 0.0
    %334 = vmatprep.subr.mxu0 0.0
    %335 = vmatpush1.msra.mxu0 0.0
    %336 = vmatprep.subr.mxu0 0.0
    %337 = vmatpush1.msra.mxu0 0.0
    %338 = vmatprep.subr.mxu0 0.0
    %339 = vmatpush1.msra.mxu0 0.0
    %340 = vmatprep.subr.mxu0 0.0
    %341 = vmatpush1.msra.mxu0 0.0
    %342 = vmatprep.subr.mxu0 0.0
    %343 = vmatpush1.msra.mxu0 0.0
    %344 = vmatprep.mubr.f32.mxu0 0.0
    %345 = vmatmul.mubr.f32.gmra.mrb[0].mxu0 %v255
    %v346 = vpop.f32.mrb[0].mxu0
    %v347 = vadd.f32 %v278, %v346
    %v348 = vpop.f32.mrb[0].mxu0
    %349 = vmatprep.mubr.f32.mxu0 0.0
    %350 = vmatmul.mubr.f32.gmra.mrb[0].mxu0 %v256
    %v351 = vpop.f32.mrb[0].mxu0
    %v352 = vadd.f32 %v278, %v351
    %v353 = vpop.f32.mrb[0].mxu0
    %354 = vdwg.mxu0
    %355 = vst [vmem:[#allocation8] sm:$0xff] %v347
    %356 = vst [vmem:[#allocation8 + $0x8] sm:$0xff] %v352
    // Predicated region
    $region42: #{mlp_forward.1} parent=1 // pred_check
      _
    $region43: #{mlp_forward.1} parent=1 // pred_check_branch
      %358 = sbr.rel (0) target = $region45
    $region44: #{mlp_forward.1} parent=1 // pred_region
      %s360 = ssub.s32 256, 256
      %361 = vsyncadd [#allocation4], %s360
      %s362 = sshll.u32 [#allocation8], 4
      %s363 = int_to_ptr.vmem [resolvable:$true] %s362
      %368 = dma.vmem_to_hbm [thread:$0]  %s363, 256, %s7, [#allocation4], 128, 128, 8
    $region45: #{mlp_forward.1} parent=1 // pred_fallthru
      _
    // Predicated region
    $region46: #{mlp_forward.1} parent=1 // pred_check
      _
    $region47: #{mlp_forward.1} parent=1 // pred_check_branch
      %370 = sbr.rel (0) target = $region49
    $region48: #{mlp_forward.1} parent=1 // pred_region
      %371 = dma.done [#allocation4], 256
    $region49: #{mlp_forward.1} parent=1 // pred_fallthru
      _
    %372 = vsyncpa [#allocation3], 1
    %373 = vsyncpa [#allocation6], 1
    %374 = vsyncpa [#allocation4], 1

</llo_original>
